<compile_context>
chip_gen: v6e
topology: v6e:2x2x1
jax: 0.10.0
libtpu: 0.0.40
codegen_flags: <defaults>
</compile_context>

<pallas_src>
import functools
import math

import jax
import jax.numpy as jnp
from jax.experimental import pallas as pl
from jax.experimental.pallas import tpu as pltpu


def _round_up(a, b):
    return (a + b - 1) // b * b


def _label_smoothing_kernel(x_ref, tgt_ref, out_ref, *, n_rows, size,
                            padding_idx, smoothing, confidence, row_tile):
    """One grid step: a (row_tile, Vp) tile of rows -> one (8, 128) partial."""
    i = pl.program_id(0)

    x = x_ref[...]                              # (TN, Vp) log-probs, native dtype
    tgt = tgt_ref[...]                          # (TN, 1) int32 target per row
    tn, v = x.shape

    smooth_val = smoothing / (size - 2)

    # Row validity: inside the real N rows AND target != padding_idx.
    rows = jax.lax.broadcasted_iota(jnp.int32, (tn, 1), 0) + i * row_tile
    row_valid = (rows < n_rows) & (tgt != padding_idx)               # (TN, 1)

    # rowsum(x) with f32 accumulation (the only full-tile widening).
    x_sum = jnp.sum(x, axis=-1, keepdims=True, dtype=jnp.float32)    # (TN, 1)

    # x[row, target[row]] via one-hot select in the native dtype. The row sum
    # has at most one nonzero, so native-dtype accumulation is exact; only the
    # (TN, 1) result is cast to f32.
    cols = jax.lax.broadcasted_iota(jnp.int32, (tn, v), 1)
    x_tgt = jnp.sum(jnp.where(cols == tgt, x, jnp.zeros((), x.dtype)),
                    axis=-1, keepdims=True).astype(jnp.float32)      # (TN, 1)

    # Padding column: one static lane slice of the already-loaded tile.
    x_pad = x[:, padding_idx:padding_idx + 1].astype(jnp.float32)    # (TN, 1)

    cross_row = (jnp.float32(smooth_val) * x_sum
                 + jnp.float32(confidence - smooth_val) * x_tgt
                 - jnp.float32(smooth_val) * x_pad)
    # SELECT (not multiply-by-mask): padded tail rows may hold garbage/NaN.
    cross_row = jnp.where(row_valid, cross_row, jnp.float32(0.0))

    # sum(td * log(td)) over one valid row is a compile-time constant.
    entropy = 0.0
    if confidence > 0.0:
        entropy += confidence * math.log(confidence)
    if smooth_val > 0.0:
        entropy += (size - 2) * smooth_val * math.log(smooth_val)
    n_valid = jnp.sum(row_valid.astype(jnp.float32))

    total = jnp.float32(entropy) * n_valid - jnp.sum(cross_row)

    # Lane-dense (8,128) per-block partial: scalar at [0,0], zeros elsewhere.
    # This epilogue is ~5 ops on a single vreg; with the byte-capped tiles the
    # grid is small, so it is negligible and kept in the known-good form.
    sub = jax.lax.broadcasted_iota(jnp.int32, (8, 128), 0)
    lane = jax.lax.broadcasted_iota(jnp.int32, (8, 128), 1)
    out_ref[...] = jnp.where((sub | lane) == 0, total, jnp.float32(0.0))


def label_smoothing_loss(x, target, *, size, padding_idx, smoothing,
                         row_tile=None):
    """x: (N, size) log-probs (f32 or bf16); target: (N,) int. Scalar f32."""
    n, v = x.shape
    assert v == size
    confidence = 1.0 - smoothing

    # Pad vocab to a lane multiple only when the inflation is small (<=12.5%);
    # zero columns contribute 0 to every term, targets/padding_idx are < size.
    v_pad = v
    if v % 128 != 0:
        cand = _round_up(v, 128)
        if (cand - v) * 8 <= v:
            x = jnp.pad(x, ((0, 0), (0, cand - v)))
            v_pad = cand

    # Generation-aware VMEM limit: 3/4 of physical, capped at 64 MiB
    # (v5e/v6e: 128 MiB phys -> 64 MiB; v7x: 64 MiB phys -> 48 MiB).
    try:
        phys_vmem = pltpu.get_tpu_info().vmem_capacity_bytes
    except Exception:
        phys_vmem = 64 * 1024 * 1024
    vmem_limit = min(phys_vmem * 3 // 4, 64 * 1024 * 1024)

    itemsize = x.dtype.itemsize
    if row_tile is None:
        x_row_bytes = v_pad * itemsize
        # Target ~16 MiB of x per tile, then clamp by a conservative working-set
        # model: double-buffered x + 32-bit tile-sized intermediates
        # (iota / select / convert) + double-buffered lane-padded int32 target
        # block (2 x 512 B/row) + (TN,1) per-row vectors.
        target_x_bytes = 16 * 1024 * 1024
        row_tile = max(8, (target_x_bytes // x_row_bytes) // 8 * 8)
        per_row_working = (2 * x_row_bytes
                           + v_pad * (4 + 2 * itemsize)
                           + 4096)
        budget = vmem_limit * 3 // 4
        row_tile = min(row_tile, max(8, (budget // per_row_working) // 8 * 8))
        row_tile = min(row_tile, _round_up(n, 8))
    assert row_tile % 8 == 0

    grid = pl.cdiv(n, row_tile)
    tgt2d = target.reshape(n, 1).astype(jnp.int32)

    kernel = functools.partial(
        _label_smoothing_kernel,
        n_rows=n, size=size, padding_idx=padding_idx,
        smoothing=smoothing, confidence=confidence, row_tile=row_tile)

    partials = pl.pallas_call(
        kernel,
        out_shape=jax.ShapeDtypeStruct((grid * 8, 128), jnp.float32),
        grid_spec=pltpu.PrefetchScalarGridSpec(
            num_scalar_prefetch=0,
            grid=(grid,),
            in_specs=[
                pl.BlockSpec((row_tile, v_pad), lambda i: (i, 0)),
                pl.BlockSpec((row_tile, 1), lambda i: (i, 0)),
            ],
            out_specs=pl.BlockSpec((8, 128), lambda i: (i, 0)),
        ),
        compiler_params=pltpu.CompilerParams(
            dimension_semantics=("parallel",),
            vmem_limit_bytes=int(vmem_limit)),
    )(x, tgt2d)

    return jnp.sum(partials)


def _reference_loss(x, target, *, size, padding_idx, smoothing):
    """Pure-JAX reference mirroring the PyTorch forward (log-space KLDiv, sum)."""
    n, v = x.shape
    confidence = 1.0 - smoothing
    cols = jnp.arange(v)[None, :]
    tgt = target[:, None]
    td = jnp.full((n, v), smoothing / (size - 2), jnp.float32)
    td = jnp.where(cols == tgt, confidence, td)
    td = td.at[:, padding_idx].set(0.0)
    td = jnp.where(tgt == padding_idx, 0.0, td)
    safe = jnp.where(td > 0, td, 1.0)
    return jnp.sum(jnp.where(td > 0, td * (jnp.log(safe) - x.astype(jnp.float32)), 0.0))


if __name__ == "__main__":
    padding_idx = 0
    smoothing = 0.1
    key = jax.random.PRNGKey(0)

    # Case 1: small demo, auto row_tile (single block), f32.
    size, n = 32, 8
    kx, kt, key = jax.random.split(key, 3)
    logits = jax.random.normal(kx, (n, size), dtype=jnp.float32)
    x = jax.nn.log_softmax(logits, axis=-1)
    target = jax.random.randint(kt, (n,), 0, size, dtype=jnp.int32)
    target = target.at[2].set(padding_idx)          # exercise padding-row mask

    loss = label_smoothing_loss(x, target, size=size,
                                padding_idx=padding_idx, smoothing=smoothing)
    loss = jax.block_until_ready(loss)
    ref = _reference_loss(x, target, size=size,
                          padding_idx=padding_idx, smoothing=smoothing)
    assert jnp.abs(loss - ref) < 1e-3 * max(1.0, float(jnp.abs(ref))), (loss, ref)

    # Case 2: N not a multiple of row_tile (masked tail block), grid=2, f32.
    size2, n2 = 32, 12
    kx2, kt2, key = jax.random.split(key, 3)
    logits2 = jax.random.normal(kx2, (n2, size2), dtype=jnp.float32)
    x2 = jax.nn.log_softmax(logits2, axis=-1)
    target2 = jax.random.randint(kt2, (n2,), 0, size2, dtype=jnp.int32)
    target2 = target2.at[5].set(padding_idx)

    loss2 = label_smoothing_loss(x2, target2, size=size2,
                                 padding_idx=padding_idx, smoothing=smoothing,
                                 row_tile=8)        # grid=2, 4 padded tail rows
    loss2 = jax.block_until_ready(loss2)
    ref2 = _reference_loss(x2, target2, size=size2,
                           padding_idx=padding_idx, smoothing=smoothing)
    assert jnp.abs(loss2 - ref2) < 1e-3 * max(1.0, float(jnp.abs(ref2))), (loss2, ref2)

    # Case 3: bf16 inputs, lane-multiple vocab, multi-block grid (bf16-native path).
    size3, n3 = 256, 24
    kx3, kt3, key = jax.random.split(key, 3)
    logits3 = jax.random.normal(kx3, (n3, size3), dtype=jnp.float32)
    x3 = jax.nn.log_softmax(logits3, axis=-1).astype(jnp.bfloat16)
    target3 = jax.random.randint(kt3, (n3,), 0, size3, dtype=jnp.int32)
    target3 = target3.at[7].set(padding_idx)

    loss3 = label_smoothing_loss(x3, target3, size=size3,
                                 padding_idx=padding_idx, smoothing=smoothing,
                                 row_tile=8)        # grid=3
    loss3 = jax.block_until_ready(loss3)
    ref3 = _reference_loss(x3, target3, size=size3,
                           padding_idx=padding_idx, smoothing=smoothing)
    assert jnp.abs(loss3 - ref3) < 1e-3 * max(1.0, float(jnp.abs(ref3))), (loss3, ref3)

    print("KERNEL_OK")
</pallas_src>

<mosaic_0001>
module attributes {stable_mosaic.version = 11 : i64} {
  func.func @_label_smoothing_kernel(%arg0: i32, %arg1: memref<8x32xf32, #tpu.memory_space<vmem>>, %arg2: memref<8x1xi32, #tpu.memory_space<vmem>>, %arg3: memref<8x128xf32, #tpu.memory_space<vmem>>) attributes {dimension_semantics = [#tpu.dimension_semantics<parallel>], iteration_bounds = array<i64: 1>, scalar_prefetch = 0 : i64, scratch_operands = 0 : i64, tpu.core_type = #tpu.core_type<tc>, window_params = [{transform_indices = @transform_0, window_bounds = array<i64: 8, 32>}, {transform_indices = @transform_1, window_bounds = array<i64: 8, 1>}, {transform_indices = @transform_2, window_bounds = array<i64: 8, 128>}]} {
    %c0 = arith.constant 0 : index
    %c0_0 = arith.constant 0 : index
    %0 = vector.load %arg1[%c0, %c0_0] : memref<8x32xf32, #tpu.memory_space<vmem>>, vector<8x32xf32>
    %c0_1 = arith.constant 0 : index
    %c0_2 = arith.constant 0 : index
    %1 = vector.load %arg2[%c0_1, %c0_2] : memref<8x1xi32, #tpu.memory_space<vmem>>, vector<8x1xi32>
    %2 = tpu.iota {dimensions = array<i32: 0>} : vector<8x1xi32>
    %c8_i32 = arith.constant 8 : i32
    %3 = arith.muli %arg0, %c8_i32 : i32
    %4 = vector.broadcast %3 : i32 to vector<8x1xi32>
    %5 = arith.addi %2, %4 : vector<8x1xi32>
    %c8_i32_3 = arith.constant 8 : i32
    %6 = vector.broadcast %c8_i32_3 : i32 to vector<8x1xi32>
    %7 = arith.cmpi slt, %5, %6 : vector<8x1xi32>
    %c0_i32 = arith.constant 0 : i32
    %8 = vector.broadcast %c0_i32 : i32 to vector<8x1xi32>
    %9 = arith.cmpi ne, %1, %8 : vector<8x1xi32>
    %10 = arith.andi %7, %9 : vector<8x1xi1>
    %cst = arith.constant dense<0.000000e+00> : vector<8xf32>
    %11 = vector.multi_reduction <add>, %0, %cst [1] : vector<8x32xf32> to vector<8xf32>
    %12 = vector.shape_cast %11 : vector<8xf32> to vector<8x1xf32>
    %13 = tpu.iota {dimensions = array<i32: 1>} : vector<8x32xi32>
    %14 = vector.broadcast %1 : vector<8x1xi32> to vector<8x32xi32>
    %15 = arith.cmpi eq, %13, %14 : vector<8x32xi32>
    %cst_4 = arith.constant 0.000000e+00 : f32
    %16 = vector.broadcast %cst_4 : f32 to vector<8x32xf32>
    %17 = arith.select %15, %0, %16 : vector<8x32xi1>, vector<8x32xf32>
    %cst_5 = arith.constant dense<0.000000e+00> : vector<8xf32>
    %18 = vector.multi_reduction <add>, %17, %cst_5 [1] : vector<8x32xf32> to vector<8xf32>
    %19 = vector.shape_cast %18 : vector<8xf32> to vector<8x1xf32>
    %20 = vector.extract_strided_slice %0 {offsets = [0, 0], sizes = [8, 1], strides = [1, 1]} : vector<8x32xf32> to vector<8x1xf32>
    %cst_6 = arith.constant 0.00333333341 : f32
    %21 = vector.broadcast %cst_6 : f32 to vector<8x1xf32>
    %22 = arith.mulf %21, %12 : vector<8x1xf32>
    %cst_7 = arith.constant 0.896666646 : f32
    %23 = vector.broadcast %cst_7 : f32 to vector<8x1xf32>
    %24 = arith.mulf %23, %19 : vector<8x1xf32>
    %25 = arith.addf %22, %24 : vector<8x1xf32>
    %cst_8 = arith.constant 0.00333333341 : f32
    %26 = vector.broadcast %cst_8 : f32 to vector<8x1xf32>
    %27 = arith.mulf %26, %20 : vector<8x1xf32>
    %28 = arith.subf %25, %27 : vector<8x1xf32>
    %cst_9 = arith.constant 0.000000e+00 : f32
    %29 = vector.broadcast %cst_9 : f32 to vector<8x1xf32>
    %30 = arith.select %10, %28, %29 : vector<8x1xi1>, vector<8x1xf32>
    %31 = arith.extui %10 : vector<8x1xi1> to vector<8x1xi32>
    %32 = arith.sitofp %31 : vector<8x1xi32> to vector<8x1xf32>
    %33 = vector.shape_cast %32 : vector<8x1xf32> to vector<1x8x1xf32>
    %cst_10 = arith.constant dense<0.000000e+00> : vector<1xf32>
    %34 = vector.multi_reduction <add>, %33, %cst_10 [1, 2] : vector<1x8x1xf32> to vector<1xf32>
    %35 = vector.shape_cast %34 : vector<1xf32> to vector<1x1x1xf32>
    %36 = vector.extract %35[0, 0, 0] : f32 from vector<1x1x1xf32>
    %cst_11 = arith.constant -0.665202737 : f32
    %37 = arith.mulf %cst_11, %36 : f32
    %38 = vector.shape_cast %30 : vector<8x1xf32> to vector<1x8x1xf32>
    %cst_12 = arith.constant dense<0.000000e+00> : vector<1xf32>
    %39 = vector.multi_reduction <add>, %38, %cst_12 [1, 2] : vector<1x8x1xf32> to vector<1xf32>
    %40 = vector.shape_cast %39 : vector<1xf32> to vector<1x1x1xf32>
    %41 = vector.extract %40[0, 0, 0] : f32 from vector<1x1x1xf32>
    %42 = arith.subf %37, %41 : f32
    %43 = tpu.iota {dimensions = array<i32: 0>} : vector<8x128xi32>
    %44 = tpu.iota {dimensions = array<i32: 1>} : vector<8x128xi32>
    %45 = arith.ori %43, %44 : vector<8x128xi32>
    %c0_i32_13 = arith.constant 0 : i32
    %46 = vector.broadcast %c0_i32_13 : i32 to vector<8x128xi32>
    %47 = arith.cmpi eq, %45, %46 : vector<8x128xi32>
    %cst_14 = arith.constant 0.000000e+00 : f32
    %48 = vector.broadcast %42 : f32 to vector<8x128xf32>
    %49 = vector.broadcast %cst_14 : f32 to vector<8x128xf32>
    %50 = arith.select %47, %48, %49 : vector<8x128xi1>, vector<8x128xf32>
    %c0_15 = arith.constant 0 : index
    %c0_16 = arith.constant 0 : index
    %51 = vector.load %arg3[%c0_15, %c0_16] : memref<8x128xf32, #tpu.memory_space<vmem>>, vector<8x128xf32>
    tpu.vector_store %arg3[%c0_15, %c0_16], %50 {strides = array<i32>} : memref<8x128xf32, #tpu.memory_space<vmem>>, vector<8x128xf32>,
    return
  }
  func.func @transform_0(%arg0: i32) -> (i32, i32) {
    %c0_i32 = arith.constant 0 : i32
    %c0_i32_0 = arith.constant 0 : i32
    return %arg0, %c0_i32 : i32, i32
  }
  func.func @transform_1(%arg0: i32) -> (i32, i32) {
    %c0_i32 = arith.constant 0 : i32
    %c0_i32_0 = arith.constant 0 : i32
    return %arg0, %c0_i32 : i32, i32
  }
  func.func @transform_2(%arg0: i32) -> (i32, i32) {
    %c0_i32 = arith.constant 0 : i32
    %c0_i32_0 = arith.constant 0 : i32
    return %arg0, %c0_i32 : i32, i32
  }
}

</mosaic_0001>

<llo_original>
// kernel: tpu_custom_call.1
$region0: #{tpu_custom_call.1}
  #allocation0 [shape = 'u32[]', space=smem, size = 0x4, offset = 0x4, fixed_abs, tag = 'smem constant byte address 0x4 - core index']
  #allocation1 [shape = 'u32[144,128]{1,0:T(1,128)}', space=vmem, size = 0x12000, scoped, tag = 'internal scratch']
  %s0 = inlined_call_operand.vmem [shape: f32[8,32], index: 0, kind: input, shape index: {}]
  %s1 = inlined_call_operand.vmem [shape: s32[8,1], index: 1, kind: input, shape index: {}]
  %s2 = inlined_call_operand.hbm [shape: f32[8,128], index: 2, kind: output, shape index: {}]
  %s3 = sld [smem:[#allocation0]]
  $region18: #{tpu_custom_call.1} parent=0
    _
  %s5 = ssub.s32 1, %s3
  %s6 = scalar_select 0, %s5, %s3
  $region1: #{tpu_custom_call.1} parent=0
    #allocation2 [shape = 'u8[4096]{0}', space=vmem, size = 0x1000, scoped, tag = 'output window, operand 0, single buffered']
    #allocation3 [shape = 's32[1]{0}', space=sflag, size = 0x4, scoped, tag = 'scoped memory for tpu_custom_call.1']
    %7 = vsyncpa [#allocation3], 0
    // Predicated region
    $region2: #{tpu_custom_call.1} parent=1 // pred_check
      _
    $region3: #{tpu_custom_call.1} parent=1 // pred_check_branch
      %9 = sbr.rel (0) target = $region5
    $region4: #{tpu_custom_call.1} parent=1 // pred_region
      _
    $region5: #{tpu_custom_call.1} parent=1 // pred_fallthru
      _
    // Predicated region
    $region6: #{tpu_custom_call.1} parent=1 // pred_check
      _
    $region7: #{tpu_custom_call.1} parent=1 // pred_check_branch
      %11 = sbr.rel (0) target = $region9
    $region8: #{tpu_custom_call.1} parent=1 // pred_region
      _
    $region9: #{tpu_custom_call.1} parent=1 // pred_fallthru
      _
    %v12 = vld [vmem:[%s0] sm:$0xff]
    %v13 = vld [vmem:[%s1] sm:$0xff]
    %v14 = vlaneseq
    %v15 = vshrl.u32 %v14, 7
    %s16 = smul.u32 0, 8
    %v17 = vstv %s16
    %v18 = vadd.s32 %v15, %v17
    %vm19 = vcmp.lt.s32.totalorder %v18, 8
    %vm20 = vcmp.ne.s32.totalorder %v13, 0
    %vm21 = vmand %vm19, %vm20
    %vm22 = vcmask 261120
    %v23 = vsel %vm22, %v12, 0.0
    %24 = vadd.xlane.f32.xlu0 %v23
    %v25 = vpop.xlane.xlu0 %24
    %v26 = vlaneseq
    %v27 = vand.u32 %v26, 127
    %28 = vset.pattern.permute.xlu0 0
    %29 = vperm.xlu0 %28, %v13
    %v30 = vpop.permute.xlu0 %29
    %vm31 = vcmp.eq.s32.totalorder %v27, %v30
    %v32 = vsel %vm31, %v12, 0.0
    %v33 = vsel %vm22, %v32, 0.0
    %34 = vadd.xlane.f32.xlu0 %v33
    %v35 = vpop.xlane.xlu0 %34
    %v36 = vmul.f32 %v25, 0.0033333334
    %v37 = vmul.f32 %v35, 0.89666665
    %v38 = vadd.f32 %v36, %v37
    %v39 = vmul.f32 %v12, 0.0033333334
    %v40 = vsub.f32 %v38, %v39
    %v41 = vsel %vm21, %v40, 0.0
    %v42 = vsel %vm21, 1, 0
    %v43 = vcvt.s32.f32 %v42
    %vm44 = vcmask 7168
    %v45 = vsel %vm44, %v43, 0.0
    %46 = vadd.xlane.f32.xlu0 %v45
    %v47 = vpop.xlane.xlu0 %46
    %v48 = vrot.slane %v47, 4
    %v49 = vadd.f32 %v47, %v48
    %v50 = vrot.slane %v49, 2
    %v51 = vadd.f32 %v49, %v50
    %v52 = vrot.slane %v51, 1
    %v53 = vadd.f32 %v51, %v52
    %s54 = vtos %v53
    %s55 = smul.f32 %s54, -0.66520274
    %v56 = vsel %vm44, %v41, 0.0
    %57 = vadd.xlane.f32.xlu0 %v56
    %v58 = vpop.xlane.xlu0 %57
    %v59 = vrot.slane %v58, 4
    %v60 = vadd.f32 %v58, %v59
    %v61 = vrot.slane %v60, 2
    %v62 = vadd.f32 %v60, %v61
    %v63 = vrot.slane %v62, 1
    %v64 = vadd.f32 %v62, %v63
    %s65 = vtos %v64
    %s66 = ssub.f32 %s55, %s65
    %v67 = vor.u32 %v15, %v27
    %vm68 = vcmp.eq.s32.totalorder %v67, 0
    %v69 = vstv %s66
    %v70 = vsel %vm68, %v69, 0.0
    %71 = vst [vmem:[#allocation2] sm:$0xff] %v70
    // Predicated region
    $region10: #{tpu_custom_call.1} parent=1 // pred_check
      _
    $region11: #{tpu_custom_call.1} parent=1 // pred_check_branch
      %73 = sbr.rel (0) target = $region13
    $region12: #{tpu_custom_call.1} parent=1 // pred_region
      %s75 = ssub.s32 128, 128
      %76 = vsyncadd [#allocation3], %s75
      %s78 = sshll.u32 [#allocation2], 4
      %s79 = int_to_ptr.vmem [resolvable:$true] %s78
      %81 = dma.vmem_to_hbm [thread:$0]  %s79, 128, %s2, [#allocation3]
    $region13: #{tpu_custom_call.1} parent=1 // pred_fallthru
      _
    // Predicated region
    $region14: #{tpu_custom_call.1} parent=1 // pred_check
      _
    $region15: #{tpu_custom_call.1} parent=1 // pred_check_branch
      %83 = sbr.rel (0) target = $region17
    $region16: #{tpu_custom_call.1} parent=1 // pred_region
      %84 = dma.done [#allocation3], 128
    $region17: #{tpu_custom_call.1} parent=1 // pred_fallthru
      _
    %85 = vsyncpa [#allocation3], 1

</llo_original>
